<compile_context>
chip_gen: v7x
topology: tpu7x:2x2x1
jax: 0.10.0
libtpu: 0.0.40
codegen_flags: <defaults>
</compile_context>

<pallas_src>
import jax
import jax.numpy as jnp
from jax.experimental import pallas as pl
from jax.experimental.pallas import tpu as pltpu

PAD = 128          # lane-dense padded feature width for state / hidden / action dims
HIDDEN = 64        # hidden width of the original module (must be <= PAD)


def _round_up(n, m):
    return ((n + m - 1) // m) * m


def mlp_kernel(x_ref, w_ref, b_ref, o_ref):
    """Fused 3-layer MLP on padded 128-lane tiles.

    x_ref: (TB, 128) f32      activation row tile
    w_ref: (384, 128) bf16    [W1; W2; W3] padded, VMEM-resident across grid steps
    b_ref: (8, 128)  f32      rows 0,1,2 = b1, b2, b3 (padded), VMEM-resident
    o_ref: (TB, 128) f32      padded Q-values (cols >= action_size are zero)
    """
    x = x_ref[...].astype(jnp.bfloat16)

    w1 = w_ref[0 * PAD:1 * PAD, :]
    w2 = w_ref[1 * PAD:2 * PAD, :]
    w3 = w_ref[2 * PAD:3 * PAD, :]
    b1 = b_ref[0:1, :]
    b2 = b_ref[1:2, :]
    b3 = b_ref[2:3, :]

    # Layer 1: bf16 matmul on the MXU, f32 accumulate; f32 bias-add + ReLU on the VPU.
    h1 = jnp.dot(x, w1, preferred_element_type=jnp.float32) + b1
    h1 = jnp.maximum(h1, 0.0)

    # Layer 2
    h2 = jnp.dot(h1.astype(jnp.bfloat16), w2, preferred_element_type=jnp.float32) + b2
    h2 = jnp.maximum(h2, 0.0)

    # Layer 3 (no activation) — lane-dense 128-wide store.
    o_ref[...] = jnp.dot(h2.astype(jnp.bfloat16), w3,
                         preferred_element_type=jnp.float32) + b3


def pack_params(params, state_size, action_size, hidden=HIDDEN):
    """Pack w1/b1/w2/b2/w3/b3 into one bf16 weight slab and one f32 bias slab."""
    assert state_size <= PAD and hidden <= PAD and action_size <= PAD

    w = jnp.zeros((3 * PAD, PAD), jnp.float32)
    w = w.at[0 * PAD:0 * PAD + state_size, :hidden].set(params["w1"])
    w = w.at[1 * PAD:1 * PAD + hidden, :hidden].set(params["w2"])
    w = w.at[2 * PAD:2 * PAD + hidden, :action_size].set(params["w3"])
    w = w.astype(jnp.bfloat16)

    b = jnp.zeros((8, PAD), jnp.float32)
    b = b.at[0, :hidden].set(params["b1"][0])
    b = b.at[1, :hidden].set(params["b2"][0])
    b = b.at[2, :action_size].set(params["b3"][0])
    return w, b


def network_forward(x, packed_w, packed_b, *, action_size, row_tile=128):
    """Forward pass of `Network` as a single fused, batch-tiled Pallas kernel.

    x: (batch, state_size) float32
    packed_w / packed_b: output of pack_params
    returns: (batch, action_size) float32
    """
    batch, state_size = x.shape

    # Row tile: multiple of 8 sublanes, capped at `row_tile`; pad batch to a multiple.
    tb = min(row_tile, _round_up(batch, 8))
    b_pad = _round_up(batch, tb)

    # Zero-pad activations to (b_pad, 128) — lane-dense and sublane-aligned.
    xp = jnp.zeros((b_pad, PAD), jnp.float32).at[:batch, :state_size].set(x)

    out = pl.pallas_call(
        mlp_kernel,
        out_shape=jax.ShapeDtypeStruct((b_pad, PAD), jnp.float32),
        grid=(b_pad // tb,),
        in_specs=[
            pl.BlockSpec((tb, PAD), lambda i: (i, 0)),        # stream x row tiles
            pl.BlockSpec((3 * PAD, PAD), lambda i: (0, 0)),   # weights: VMEM-resident
            pl.BlockSpec((8, PAD), lambda i: (0, 0)),         # biases:  VMEM-resident
        ],
        out_specs=pl.BlockSpec((tb, PAD), lambda i: (i, 0)),
        compiler_params=pltpu.CompilerParams(
            dimension_semantics=("parallel",)),               # v7x: shard batch on 2 TCs
    )(xp, packed_w, packed_b)

    return out[:batch, :action_size]


def init_params(key, state_size, action_size, hidden=HIDDEN):
    """Deterministic synthetic parameters (PyTorch-style uniform fan-in init).

    Weights are stored as (in_features, out_features) so the math is y = x @ W + b.
    """
    ks = jax.random.split(key, 6)

    def linear(kw, kb, fan_in, fan_out):
        bound = 1.0 / jnp.sqrt(jnp.float32(fan_in))
        w = jax.random.uniform(kw, (fan_in, fan_out), jnp.float32, -bound, bound)
        b = jax.random.uniform(kb, (1, fan_out), jnp.float32, -bound, bound)
        return w, b

    w1, b1 = linear(ks[0], ks[1], state_size, hidden)
    w2, b2 = linear(ks[2], ks[3], hidden, hidden)
    w3, b3 = linear(ks[4], ks[5], hidden, action_size)
    return {"w1": w1, "b1": b1, "w2": w2, "b2": b2, "w3": w3, "b3": b3}


def network_forward_ref(x, p):
    """Pure-JAX reference mirroring the kernel's bf16-operand / f32-accumulate math."""
    f32 = jnp.float32
    bf = lambda a: a.astype(jnp.bfloat16).astype(f32)
    h1 = jnp.maximum(jnp.dot(bf(x), bf(p["w1"])) + p["b1"], 0.0)
    h2 = jnp.maximum(jnp.dot(bf(h1), bf(p["w2"])) + p["b2"], 0.0)
    return jnp.dot(bf(h2), bf(p["w3"])) + p["b3"]


if __name__ == "__main__":
    # LunarLander-v2: observation dim = 8, action dim = 4
    state_size, action_size, batch = 8, 4, 2

    key = jax.random.PRNGKey(0)
    kp, kx = jax.random.split(key)
    params = init_params(kp, state_size, action_size)
    packed_w, packed_b = pack_params(params, state_size, action_size)
    x = jax.random.normal(kx, (batch, state_size), jnp.float32)

    out = network_forward(x, packed_w, packed_b, action_size=action_size)
    out = jax.block_until_ready(out)

    ref = network_forward_ref(x, params)
    assert out.shape == (batch, action_size), out.shape
    assert jnp.allclose(out, ref, atol=1e-3, rtol=1e-3), "mismatch vs reference"

    # TODO(synk): the downstream Q-value consumer (argmax action selection / TD loss)
    # could be fused into this kernel to amortize launch+DMA latency further.
    print("KERNEL_OK")
</pallas_src>

<mosaic_0001>
module attributes {stable_mosaic.version = 11 : i64} {
  func.func @mlp_kernel(%arg0: i32, %arg1: memref<8x128xf32, #tpu.memory_space<vmem>>, %arg2: memref<384x128xbf16, #tpu.memory_space<vmem>>, %arg3: memref<8x128xf32, #tpu.memory_space<vmem>>, %arg4: memref<8x128xf32, #tpu.memory_space<vmem>>) attributes {dimension_semantics = [#tpu.dimension_semantics<parallel>], iteration_bounds = array<i64: 1>, scalar_prefetch = 0 : i64, scratch_operands = 0 : i64, tpu.core_type = #tpu.core_type<tc>, window_params = [{transform_indices = @transform_0, window_bounds = array<i64: 8, 128>}, {pipeline_mode = #tpu.pipeline_mode<synchronous>, transform_indices = @transform_1, window_bounds = array<i64: 384, 128>}, {pipeline_mode = #tpu.pipeline_mode<synchronous>, transform_indices = @transform_2, window_bounds = array<i64: 8, 128>}, {transform_indices = @transform_3, window_bounds = array<i64: 8, 128>}]} {
    %c0 = arith.constant 0 : index
    %c0_0 = arith.constant 0 : index
    %0 = vector.load %arg1[%c0, %c0_0] : memref<8x128xf32, #tpu.memory_space<vmem>>, vector<8x128xf32>
    %1 = arith.truncf %0 : vector<8x128xf32> to vector<8x128xbf16>
    %c0_1 = arith.constant 0 : index
    %c0_2 = arith.constant 0 : index
    %2 = vector.load %arg2[%c0_1, %c0_2] : memref<384x128xbf16, #tpu.memory_space<vmem>>, vector<128x128xbf16>
    %c128 = arith.constant 128 : index
    %c0_3 = arith.constant 0 : index
    %3 = vector.load %arg2[%c128, %c0_3] : memref<384x128xbf16, #tpu.memory_space<vmem>>, vector<128x128xbf16>
    %c256 = arith.constant 256 : index
    %c0_4 = arith.constant 0 : index
    %4 = vector.load %arg2[%c256, %c0_4] : memref<384x128xbf16, #tpu.memory_space<vmem>>, vector<128x128xbf16>
    %c0_5 = arith.constant 0 : index
    %c0_6 = arith.constant 0 : index
    %5 = vector.load %arg3[%c0_5, %c0_6] : memref<8x128xf32, #tpu.memory_space<vmem>>, vector<1x128xf32>
    %c1 = arith.constant 1 : index
    %c0_7 = arith.constant 0 : index
    %6 = vector.load %arg3[%c1, %c0_7] : memref<8x128xf32, #tpu.memory_space<vmem>>, vector<1x128xf32>
    %c2 = arith.constant 2 : index
    %c0_8 = arith.constant 0 : index
    %7 = vector.load %arg3[%c2, %c0_8] : memref<8x128xf32, #tpu.memory_space<vmem>>, vector<1x128xf32>
    %cst = arith.constant dense<0.000000e+00> : vector<8x128xf32>
    %8 = tpu.matmul %1, %2, %cst {dimension_numbers = #tpu.dot_dimension_numbers<[1], [0], [0], [1], [0, 0, 1, 1], [], []>} : vector<8x128xbf16>, vector<128x128xbf16>, vector<8x128xf32> -> vector<8x128xf32>
    %9 = vector.broadcast %5 : vector<1x128xf32> to vector<8x128xf32>
    %10 = arith.addf %8, %9 : vector<8x128xf32>
    %cst_9 = arith.constant 0.000000e+00 : f32
    %11 = vector.broadcast %cst_9 : f32 to vector<8x128xf32>
    %12 = arith.maximumf %10, %11 : vector<8x128xf32>
    %13 = arith.truncf %12 : vector<8x128xf32> to vector<8x128xbf16>
    %cst_10 = arith.constant dense<0.000000e+00> : vector<8x128xf32>
    %14 = tpu.matmul %13, %3, %cst_10 {dimension_numbers = #tpu.dot_dimension_numbers<[1], [0], [0], [1], [0, 0, 1, 1], [], []>} : vector<8x128xbf16>, vector<128x128xbf16>, vector<8x128xf32> -> vector<8x128xf32>
    %15 = vector.broadcast %6 : vector<1x128xf32> to vector<8x128xf32>
    %16 = arith.addf %14, %15 : vector<8x128xf32>
    %cst_11 = arith.constant 0.000000e+00 : f32
    %17 = vector.broadcast %cst_11 : f32 to vector<8x128xf32>
    %18 = arith.maximumf %16, %17 : vector<8x128xf32>
    %19 = arith.truncf %18 : vector<8x128xf32> to vector<8x128xbf16>
    %cst_12 = arith.constant dense<0.000000e+00> : vector<8x128xf32>
    %20 = tpu.matmul %19, %4, %cst_12 {dimension_numbers = #tpu.dot_dimension_numbers<[1], [0], [0], [1], [0, 0, 1, 1], [], []>} : vector<8x128xbf16>, vector<128x128xbf16>, vector<8x128xf32> -> vector<8x128xf32>
    %21 = vector.broadcast %7 : vector<1x128xf32> to vector<8x128xf32>
    %22 = arith.addf %20, %21 : vector<8x128xf32>
    %c0_13 = arith.constant 0 : index
    %c0_14 = arith.constant 0 : index
    %23 = vector.load %arg4[%c0_13, %c0_14] : memref<8x128xf32, #tpu.memory_space<vmem>>, vector<8x128xf32>
    tpu.vector_store %arg4[%c0_13, %c0_14], %22 {strides = array<i32>} : memref<8x128xf32, #tpu.memory_space<vmem>>, vector<8x128xf32>,
    return
  }
  func.func @transform_0(%arg0: i32) -> (i32, i32) {
    %c0_i32 = arith.constant 0 : i32
    %c0_i32_0 = arith.constant 0 : i32
    return %arg0, %c0_i32 : i32, i32
  }
  func.func @transform_1(%arg0: i32) -> (i32, i32) {
    %c0_i32 = arith.constant 0 : i32
    %c0_i32_0 = arith.constant 0 : i32
    %c0_i32_1 = arith.constant 0 : i32
    return %c0_i32, %c0_i32_0 : i32, i32
  }
  func.func @transform_2(%arg0: i32) -> (i32, i32) {
    %c0_i32 = arith.constant 0 : i32
    %c0_i32_0 = arith.constant 0 : i32
    %c0_i32_1 = arith.constant 0 : i32
    return %c0_i32, %c0_i32_0 : i32, i32
  }
  func.func @transform_3(%arg0: i32) -> (i32, i32) {
    %c0_i32 = arith.constant 0 : i32
    %c0_i32_0 = arith.constant 0 : i32
    return %arg0, %c0_i32 : i32, i32
  }
}

</mosaic_0001>

<llo_original>
// kernel: tpu_custom_call.1
$region0: #{tpu_custom_call.1}
  #allocation0 [shape = 'u32[]', space=smem, size = 0x4, offset = 0x4, fixed_abs, tag = 'smem constant byte address 0x4 - core index']
  #allocation1 [shape = 'u32[144,128]{1,0:T(1,128)}', space=vmem, size = 0x12000, scoped, tag = 'internal scratch']
  %s0 = inlined_call_operand.hbm [shape: f32[8,128], index: 0, kind: input, shape index: {}]
  %s1 = inlined_call_operand.hbm [shape: bf16[384,128], index: 1, kind: input, shape index: {}]
  %s2 = inlined_call_operand.hbm [shape: f32[8,128], index: 2, kind: input, shape index: {}]
  %s3 = inlined_call_operand.hbm [shape: f32[8,128], index: 3, kind: output, shape index: {}]
  %s4 = sld [smem:[#allocation0]]
  $region34: #{tpu_custom_call.1} parent=0
    _
  %s6 = ssub.s32 1, %s4
  %s7 = scalar_select 0, %s6, %s4
  $region1: #{tpu_custom_call.1} parent=0
    #allocation2 [shape = 'u8[4096]{0}', space=vmem, size = 0x1000, scoped, tag = 'input window, operand 0, single buffered']
    #allocation3 [shape = 's32[1]{0}', space=sflag, size = 0x4, scoped, tag = 'scoped memory for tpu_custom_call.1']
    #allocation4 [shape = 's32[1]{0}', space=sflag, size = 0x4, scoped, tag = 'scoped memory for tpu_custom_call.1']
    #allocation5 [shape = 'u8[98304]{0}', space=vmem, size = 0x18000, scoped, tag = 'input window, operand 1, single buffered']
    #allocation6 [shape = 's32[1]{0}', space=sflag, size = 0x4, scoped, tag = 'scoped memory for tpu_custom_call.1']
    #allocation7 [shape = 'u8[4096]{0}', space=vmem, size = 0x1000, scoped, tag = 'input window, operand 2, single buffered']
    #allocation8 [shape = 'u8[4096]{0}', space=vmem, size = 0x1000, scoped, tag = 'output window, operand 0, single buffered']
    %8 = vsyncpa [#allocation3], 0
    %9 = vsyncpa [#allocation6], 0
    %10 = vsyncpa [#allocation4], 0
    // Predicated region
    $region2: #{tpu_custom_call.1} parent=1 // pred_check
      _
    $region3: #{tpu_custom_call.1} parent=1 // pred_check_branch
      %12 = sbr.rel (0) target = $region5
    $region4: #{tpu_custom_call.1} parent=1 // pred_region
      %s14 = ssub.s32 128, 128
      %15 = vsyncadd [#allocation3], %s14
      %s17 = sshll.u32 [#allocation2], 4
      %s18 = int_to_ptr.vmem [resolvable:$true] %s17
      %20 = dma.hbm_to_vmem [thread:$0]  %s0, 128, %s18, [#allocation3]
    $region5: #{tpu_custom_call.1} parent=1 // pred_fallthru
      _
    // Predicated region
    $region6: #{tpu_custom_call.1} parent=1 // pred_check
      _
    $region7: #{tpu_custom_call.1} parent=1 // pred_check_branch
      %22 = sbr.rel (0) target = $region9
    $region8: #{tpu_custom_call.1} parent=1 // pred_region
      %s24 = ssub.s32 3072, 3072
      %25 = vsyncadd [#allocation6], %s24
      %s26 = sshll.u32 [#allocation5], 4
      %s27 = int_to_ptr.vmem [resolvable:$true] %s26
      %32 = dma.hbm_to_vmem [thread:$0]  %s1, 3072, %s27, [#allocation6], 64, 64, 4
    $region9: #{tpu_custom_call.1} parent=1 // pred_fallthru
      _
    // Predicated region
    $region10: #{tpu_custom_call.1} parent=1 // pred_check
      _
    $region11: #{tpu_custom_call.1} parent=1 // pred_check_branch
      %34 = sbr.rel (0) target = $region13
    $region12: #{tpu_custom_call.1} parent=1 // pred_region
      %s36 = ssub.s32 128, 128
      %37 = vsyncadd [#allocation6], %s36
      %s39 = sshll.u32 [#allocation7], 4
      %s40 = int_to_ptr.vmem [resolvable:$true] %s39
      %42 = dma.hbm_to_vmem [thread:$0]  %s2, 128, %s40, [#allocation6]
    $region13: #{tpu_custom_call.1} parent=1 // pred_fallthru
      _
    // Predicated region
    $region14: #{tpu_custom_call.1} parent=1 // pred_check
      _
    $region15: #{tpu_custom_call.1} parent=1 // pred_check_branch
      %44 = sbr.rel (0) target = $region17
    $region16: #{tpu_custom_call.1} parent=1 // pred_region
      %45 = dma.done [#allocation3], 128
    $region17: #{tpu_custom_call.1} parent=1 // pred_fallthru
      _
    // Predicated region
    $region18: #{tpu_custom_call.1} parent=1 // pred_check
      _
    $region19: #{tpu_custom_call.1} parent=1 // pred_check_branch
      %47 = sbr.rel (0) target = $region21
    $region20: #{tpu_custom_call.1} parent=1 // pred_region
      %48 = dma.done [#allocation6], 3072
    $region21: #{tpu_custom_call.1} parent=1 // pred_fallthru
      _
    // Predicated region
    $region22: #{tpu_custom_call.1} parent=1 // pred_check
      _
    $region23: #{tpu_custom_call.1} parent=1 // pred_check_branch
      %50 = sbr.rel (0) target = $region25
    $region24: #{tpu_custom_call.1} parent=1 // pred_region
      %51 = dma.done [#allocation6], 128
    $region25: #{tpu_custom_call.1} parent=1 // pred_fallthru
      _
    %v53 = vld [vmem:[#allocation2] sm:$0xff]
    %v54 = vpack.c.bf16 %v53, %v53
    %v55 = vld [vmem:[#allocation5] sm:$0xf]
    %v56 = vld [vmem:[#allocation5 + $0x4] sm:$0xf]
    %v57 = vld [vmem:[#allocation5 + $0x8] sm:$0xf]
    %v58 = vld [vmem:[#allocation5 + $0xc] sm:$0xf]
    %v59 = vld [vmem:[#allocation5 + $0x10] sm:$0xf]
    %v60 = vld [vmem:[#allocation5 + $0x14] sm:$0xf]
    %v61 = vld [vmem:[#allocation5 + $0x18] sm:$0xf]
    %v62 = vld [vmem:[#allocation5 + $0x1c] sm:$0xf]
    %v63 = vld [vmem:[#allocation5 + $0x20] sm:$0xf]
    %v64 = vld [vmem:[#allocation5 + $0x24] sm:$0xf]
    %v65 = vld [vmem:[#allocation5 + $0x28] sm:$0xf]
    %v66 = vld [vmem:[#allocation5 + $0x2c] sm:$0xf]
    %v67 = vld [vmem:[#allocation5 + $0x30] sm:$0xf]
    %v68 = vld [vmem:[#allocation5 + $0x34] sm:$0xf]
    %v69 = vld [vmem:[#allocation5 + $0x38] sm:$0xf]
    %v70 = vld [vmem:[#allocation5 + $0x3c] sm:$0xf]
    %v71 = vld [vmem:[#allocation5 + $0x40] sm:$0xf]
    %v72 = vld [vmem:[#allocation5 + $0x44] sm:$0xf]
    %v73 = vld [vmem:[#allocation5 + $0x48] sm:$0xf]
    %v74 = vld [vmem:[#allocation5 + $0x4c] sm:$0xf]
    %v75 = vld [vmem:[#allocation5 + $0x50] sm:$0xf]
    %v76 = vld [vmem:[#allocation5 + $0x54] sm:$0xf]
    %v77 = vld [vmem:[#allocation5 + $0x58] sm:$0xf]
    %v78 = vld [vmem:[#allocation5 + $0x5c] sm:$0xf]
    %v79 = vld [vmem:[#allocation5 + $0x60] sm:$0xf]
    %v80 = vld [vmem:[#allocation5 + $0x64] sm:$0xf]
    %v81 = vld [vmem:[#allocation5 + $0x68] sm:$0xf]
    %v82 = vld [vmem:[#allocation5 + $0x6c] sm:$0xf]
    %v83 = vld [vmem:[#allocation5 + $0x70] sm:$0xf]
    %v84 = vld [vmem:[#allocation5 + $0x74] sm:$0xf]
    %v85 = vld [vmem:[#allocation5 + $0x78] sm:$0xf]
    %v86 = vld [vmem:[#allocation5 + $0x7c] sm:$0xf]
    %v87 = vld [vmem:[#allocation5 + $0x80] sm:$0xf]
    %v88 = vld [vmem:[#allocation5 + $0x84] sm:$0xf]
    %v89 = vld [vmem:[#allocation5 + $0x88] sm:$0xf]
    %v90 = vld [vmem:[#allocation5 + $0x8c] sm:$0xf]
    %v91 = vld [vmem:[#allocation5 + $0x90] sm:$0xf]
    %v92 = vld [vmem:[#allocation5 + $0x94] sm:$0xf]
    %v93 = vld [vmem:[#allocation5 + $0x98] sm:$0xf]
    %v94 = vld [vmem:[#allocation5 + $0x9c] sm:$0xf]
    %v95 = vld [vmem:[#allocation5 + $0xa0] sm:$0xf]
    %v96 = vld [vmem:[#allocation5 + $0xa4] sm:$0xf]
    %v97 = vld [vmem:[#allocation5 + $0xa8] sm:$0xf]
    %v98 = vld [vmem:[#allocation5 + $0xac] sm:$0xf]
    %v99 = vld [vmem:[#allocation5 + $0xb0] sm:$0xf]
    %v100 = vld [vmem:[#allocation5 + $0xb4] sm:$0xf]
    %v101 = vld [vmem:[#allocation5 + $0xb8] sm:$0xf]
    %v102 = vld [vmem:[#allocation5 + $0xbc] sm:$0xf]
    %v103 = vld [vmem:[#allocation7] sm:$0x1]
    %v104 = vld [vmem:[#allocation7 + $0x1] sm:$0x1]
    %v105 = vld [vmem:[#allocation7 + $0x2] sm:$0x1]
    %v106 = vlaneseq
    %v107 = vshrl.u32 %v106, 7
    %v108 = vsub.s32 0, %v107
    %v109 = vrot.slane %v103, %v108
    %v126 = vunpack.c.l.b16 %v55
    %v127 = vunpack.c.l.b16 %v56
    %v128 = vunpack.c.l.b16 %v57
    %v129 = vunpack.c.l.b16 %v58
    %v130 = vunpack.c.l.b16 %v59
    %v131 = vunpack.c.l.b16 %v60
    %v132 = vunpack.c.l.b16 %v61
    %v133 = vunpack.c.l.b16 %v62
    %v134 = vunpack.c.l.b16 %v63
    %v135 = vunpack.c.l.b16 %v64
    %v136 = vunpack.c.l.b16 %v65
    %v137 = vunpack.c.l.b16 %v66
    %v138 = vunpack.c.l.b16 %v67
    %v139 = vunpack.c.l.b16 %v68
    %v140 = vunpack.c.l.b16 %v69
    %v141 = vunpack.c.l.b16 %v70
    %v142 = vpack.c.b16 %v127, %v126
    %v143 = vpack.c.b16 %v129, %v128
    %v144 = vpack.c.b16 %v131, %v130
    %v145 = vpack.c.b16 %v133, %v132
    %v146 = vpack.c.b16 %v135, %v134
    %v147 = vpack.c.b16 %v137, %v136
    %v148 = vpack.c.b16 %v139, %v138
    %v149 = vpack.c.b16 %v141, %v140
    %158 = vmatprep.subr.bf16.mxu0 0
    %159 = vmatpush1.bf16.msra.mxu0 %v142
    %160 = vmatprep.subr.bf16.mxu0 0
    %161 = vmatpush1.bf16.msra.mxu0 %v143
    %162 = vmatprep.subr.bf16.mxu0 0
    %163 = vmatpush1.bf16.msra.mxu0 %v144
    %164 = vmatprep.subr.bf16.mxu0 0
    %165 = vmatpush1.bf16.msra.mxu0 %v145
    %166 = vmatprep.subr.bf16.mxu0 0
    %167 = vmatpush1.bf16.msra.mxu0 %v146
    %168 = vmatprep.subr.bf16.mxu0 0
    %169 = vmatpush1.bf16.msra.mxu0 %v147
    %170 = vmatprep.subr.bf16.mxu0 0
    %171 = vmatpush1.bf16.msra.mxu0 %v148
    %172 = vmatprep.subr.bf16.mxu0 0
    %173 = vmatpush1.bf16.msra.mxu0 %v149
    %174 = vmatprep.subr.bf16.mxu0 0
    %175 = vmatpush1.bf16.msra.mxu0 0
    %176 = vmatprep.subr.bf16.mxu0 0
    %177 = vmatpush1.bf16.msra.mxu0 0
    %178 = vmatprep.subr.bf16.mxu0 0
    %179 = vmatpush1.bf16.msra.mxu0 0
    %180 = vmatprep.subr.bf16.mxu0 0
    %181 = vmatpush1.bf16.msra.mxu0 0
    %182 = vmatprep.subr.bf16.mxu0 0
    %183 = vmatpush1.bf16.msra.mxu0 0
    %184 = vmatprep.subr.bf16.mxu0 0
    %185 = vmatpush1.bf16.msra.mxu0 0
    %186 = vmatprep.subr.bf16.mxu0 0
    %187 = vmatpush1.bf16.msra.mxu0 0
    %188 = vmatprep.subr.bf16.mxu0 0
    %189 = vmatpush1.bf16.msra.mxu0 0
    %190 = vmatprep.mubr.bf16.mxu0 0
    %191 = vmatmul.mubr.bf16.gmra.mrb[0].mxu0 %v54
    %v192 = vpop.f32.mrb[0].mxu0
    %v193 = vadd.f32 %v109, %v192
    %v194 = vpop.f32.mrb[0].mxu0
    %v195 = vpop.f32.mrb[0].mxu0
    %v196 = vpop.f32.mrb[0].mxu0
    %197 = vdwg.mxu0
    %v198 = vmax.f32 %v193, 0.0
    %v199 = vpack.c.bf16 %v198, %v198
    %v200 = vlaneseq
    %v201 = vshrl.u32 %v200, 7
    %v202 = vsub.s32 0, %v201
    %v203 = vrot.slane %v104, %v202
    %v220 = vunpack.c.l.b16 %v71
    %v221 = vunpack.c.l.b16 %v72
    %v222 = vunpack.c.l.b16 %v73
    %v223 = vunpack.c.l.b16 %v74
    %v224 = vunpack.c.l.b16 %v75
    %v225 = vunpack.c.l.b16 %v76
    %v226 = vunpack.c.l.b16 %v77
    %v227 = vunpack.c.l.b16 %v78
    %v228 = vunpack.c.l.b16 %v79
    %v229 = vunpack.c.l.b16 %v80
    %v230 = vunpack.c.l.b16 %v81
    %v231 = vunpack.c.l.b16 %v82
    %v232 = vunpack.c.l.b16 %v83
    %v233 = vunpack.c.l.b16 %v84
    %v234 = vunpack.c.l.b16 %v85
    %v235 = vunpack.c.l.b16 %v86
    %v236 = vpack.c.b16 %v221, %v220
    %v237 = vpack.c.b16 %v223, %v222
    %v238 = vpack.c.b16 %v225, %v224
    %v239 = vpack.c.b16 %v227, %v226
    %v240 = vpack.c.b16 %v229, %v228
    %v241 = vpack.c.b16 %v231, %v230
    %v242 = vpack.c.b16 %v233, %v232
    %v243 = vpack.c.b16 %v235, %v234
    %252 = vmatprep.subr.bf16.mxu0 0
    %253 = vmatpush1.bf16.msra.mxu0 %v236
    %254 = vmatprep.subr.bf16.mxu0 0
    %255 = vmatpush1.bf16.msra.mxu0 %v237
    %256 = vmatprep.subr.bf16.mxu0 0
    %257 = vmatpush1.bf16.msra.mxu0 %v238
    %258 = vmatprep.subr.bf16.mxu0 0
    %259 = vmatpush1.bf16.msra.mxu0 %v239
    %260 = vmatprep.subr.bf16.mxu0 0
    %261 = vmatpush1.bf16.msra.mxu0 %v240
    %262 = vmatprep.subr.bf16.mxu0 0
    %263 = vmatpush1.bf16.msra.mxu0 %v241
    %264 = vmatprep.subr.bf16.mxu0 0
    %265 = vmatpush1.bf16.msra.mxu0 %v242
    %266 = vmatprep.subr.bf16.mxu0 0
    %267 = vmatpush1.bf16.msra.mxu0 %v243
    %268 = vmatprep.subr.bf16.mxu0 0
    %269 = vmatpush1.bf16.msra.mxu0 0
    %270 = vmatprep.subr.bf16.mxu0 0
    %271 = vmatpush1.bf16.msra.mxu0 0
    %272 = vmatprep.subr.bf16.mxu0 0
    %273 = vmatpush1.bf16.msra.mxu0 0
    %274 = vmatprep.subr.bf16.mxu0 0
    %275 = vmatpush1.bf16.msra.mxu0 0
    %276 = vmatprep.subr.bf16.mxu0 0
    %277 = vmatpush1.bf16.msra.mxu0 0
    %278 = vmatprep.subr.bf16.mxu0 0
    %279 = vmatpush1.bf16.msra.mxu0 0
    %280 = vmatprep.subr.bf16.mxu0 0
    %281 = vmatpush1.bf16.msra.mxu0 0
    %282 = vmatprep.subr.bf16.mxu0 0
    %283 = vmatpush1.bf16.msra.mxu0 0
    %284 = vmatprep.mubr.bf16.mxu0 0
    %285 = vmatmul.mubr.bf16.gmra.mrb[0].mxu0 %v199
    %v286 = vpop.f32.mrb[0].mxu0
    %v287 = vadd.f32 %v203, %v286
    %v288 = vpop.f32.mrb[0].mxu0
    %v289 = vpop.f32.mrb[0].mxu0
    %v290 = vpop.f32.mrb[0].mxu0
    %291 = vdwg.mxu0
    %v292 = vmax.f32 %v287, 0.0
    %v293 = vpack.c.bf16 %v292, %v292
    %v294 = vlaneseq
    %v295 = vshrl.u32 %v294, 7
    %v296 = vsub.s32 0, %v295
    %v297 = vrot.slane %v105, %v296
    %v314 = vunpack.c.l.b16 %v87
    %v315 = vunpack.c.l.b16 %v88
    %v316 = vunpack.c.l.b16 %v89
    %v317 = vunpack.c.l.b16 %v90
    %v318 = vunpack.c.l.b16 %v91
    %v319 = vunpack.c.l.b16 %v92
    %v320 = vunpack.c.l.b16 %v93
    %v321 = vunpack.c.l.b16 %v94
    %v322 = vunpack.c.l.b16 %v95
    %v323 = vunpack.c.l.b16 %v96
    %v324 = vunpack.c.l.b16 %v97
    %v325 = vunpack.c.l.b16 %v98
    %v326 = vunpack.c.l.b16 %v99
    %v327 = vunpack.c.l.b16 %v100
    %v328 = vunpack.c.l.b16 %v101
    %v329 = vunpack.c.l.b16 %v102
    %v330 = vpack.c.b16 %v315, %v314
    %v331 = vpack.c.b16 %v317, %v316
    %v332 = vpack.c.b16 %v319, %v318
    %v333 = vpack.c.b16 %v321, %v320
    %v334 = vpack.c.b16 %v323, %v322
    %v335 = vpack.c.b16 %v325, %v324
    %v336 = vpack.c.b16 %v327, %v326
    %v337 = vpack.c.b16 %v329, %v328
    %346 = vmatprep.subr.bf16.mxu0 0
    %347 = vmatpush1.bf16.msra.mxu0 %v330
    %348 = vmatprep.subr.bf16.mxu0 0
    %349 = vmatpush1.bf16.msra.mxu0 %v331
    %350 = vmatprep.subr.bf16.mxu0 0
    %351 = vmatpush1.bf16.msra.mxu0 %v332
    %352 = vmatprep.subr.bf16.mxu0 0
    %353 = vmatpush1.bf16.msra.mxu0 %v333
    %354 = vmatprep.subr.bf16.mxu0 0
    %355 = vmatpush1.bf16.msra.mxu0 %v334
    %356 = vmatprep.subr.bf16.mxu0 0
    %357 = vmatpush1.bf16.msra.mxu0 %v335
    %358 = vmatprep.subr.bf16.mxu0 0
    %359 = vmatpush1.bf16.msra.mxu0 %v336
    %360 = vmatprep.subr.bf16.mxu0 0
    %361 = vmatpush1.bf16.msra.mxu0 %v337
    %362 = vmatprep.subr.bf16.mxu0 0
    %363 = vmatpush1.bf16.msra.mxu0 0
    %364 = vmatprep.subr.bf16.mxu0 0
    %365 = vmatpush1.bf16.msra.mxu0 0
    %366 = vmatprep.subr.bf16.mxu0 0
    %367 = vmatpush1.bf16.msra.mxu0 0
    %368 = vmatprep.subr.bf16.mxu0 0
    %369 = vmatpush1.bf16.msra.mxu0 0
    %370 = vmatprep.subr.bf16.mxu0 0
    %371 = vmatpush1.bf16.msra.mxu0 0
    %372 = vmatprep.subr.bf16.mxu0 0
    %373 = vmatpush1.bf16.msra.mxu0 0
    %374 = vmatprep.subr.bf16.mxu0 0
    %375 = vmatpush1.bf16.msra.mxu0 0
    %376 = vmatprep.subr.bf16.mxu0 0
    %377 = vmatpush1.bf16.msra.mxu0 0
    %378 = vmatprep.mubr.bf16.mxu0 0
    %379 = vmatmul.mubr.bf16.gmra.mrb[0].mxu0 %v293
    %v380 = vpop.f32.mrb[0].mxu0
    %v381 = vadd.f32 %v297, %v380
    %v382 = vpop.f32.mrb[0].mxu0
    %v383 = vpop.f32.mrb[0].mxu0
    %v384 = vpop.f32.mrb[0].mxu0
    %385 = vdwg.mxu0
    %386 = vst [vmem:[#allocation8] sm:$0xff] %v381
    // Predicated region
    $region26: #{tpu_custom_call.1} parent=1 // pred_check
      _
    $region27: #{tpu_custom_call.1} parent=1 // pred_check_branch
      %388 = sbr.rel (0) target = $region29
    $region28: #{tpu_custom_call.1} parent=1 // pred_region
      %s390 = ssub.s32 128, 128
      %391 = vsyncadd [#allocation4], %s390
      %s393 = sshll.u32 [#allocation8], 4
      %s394 = int_to_ptr.vmem [resolvable:$true] %s393
      %396 = dma.vmem_to_hbm [thread:$0]  %s394, 128, %s3, [#allocation4]
    $region29: #{tpu_custom_call.1} parent=1 // pred_fallthru
      _
    // Predicated region
    $region30: #{tpu_custom_call.1} parent=1 // pred_check
      _
    $region31: #{tpu_custom_call.1} parent=1 // pred_check_branch
      %398 = sbr.rel (0) target = $region33
    $region32: #{tpu_custom_call.1} parent=1 // pred_region
      %399 = dma.done [#allocation4], 128
    $region33: #{tpu_custom_call.1} parent=1 // pred_fallthru
      _
    %400 = vsyncpa [#allocation3], 1
    %401 = vsyncpa [#allocation6], 1
    %402 = vsyncpa [#allocation4], 1

</llo_original>
